<compile_context>
chip_gen: v7x
topology: tpu7x:2x2x1
jax: 0.10.0
libtpu: 0.0.40
codegen_flags: <defaults>
</compile_context>

<pallas_src>
import jax
import jax.numpy as jnp
import numpy as np
from jax.experimental import pallas as pl
from jax.experimental.pallas import tpu as pltpu


# ----------------------------- Pallas kernel -----------------------------

def pointer_kernel(sd_ref, x_ref, h_ref,
                   wih_ref, whh_ref, bih_ref, bhh_ref,
                   wbig_ref, wah_ref, wpc_ref, va_ref, vp_ref,
                   probs_ref, hh_ref):
    """One batch block (TB rows) per grid step.

    sd_ref        : (TB, L, 2H)  [static ; dynamic] encoder states, lane-dense in H
    x_ref / h_ref : (TB, H)      decoder input / previous hidden (compute dtype)
    wih / whh     : (H, 3H)      GRU weights, pre-transposed, gate order (r, z, n)
    bih / bhh     : (1, 3H)      f32
    wbig          : (2H, 2H)     [[WaS^T, WpS^T], [WaD^T, 0]]  (fused encoder proj)
    wah / wpc     : (H, H)       attention-hidden / pointer-context weights, transposed
    va / vp       : (1, H)       f32
    probs_ref     : (TB, LP)     LP = L padded up to a 128-lane multiple
    hh_ref        : (TB, HP)     HP = H padded up to a 128-lane multiple
    """
    f32 = jnp.float32
    TB, L, H2 = sd_ref.shape
    H = H2 // 2

    x = x_ref[...]                                   # (TB, H)
    h = h_ref[...]                                   # (TB, H)

    # --- GRU cell: two fused gate matmuls, f32 epilogue ------------------
    gi = jnp.dot(x, wih_ref[...], preferred_element_type=f32) + bih_ref[...]
    gh = jnp.dot(h, whh_ref[...], preferred_element_type=f32) + bhh_ref[...]
    r = jax.nn.sigmoid(gi[:, :H] + gh[:, :H])
    z = jax.nn.sigmoid(gi[:, H:2 * H] + gh[:, H:2 * H])
    n = jnp.tanh(gi[:, 2 * H:] + r * gh[:, 2 * H:])
    h_new = (1.0 - z) * n + z * h.astype(f32)        # (TB, H) f32 == rnn_out

    # --- fused encoder projection: one MXU push for attention AND pointer ---
    sd = sd_ref[...]                                 # (TB, L, 2H)
    sd_flat = sd.reshape(TB * L, 2 * H)
    fused = jnp.dot(sd_flat, wbig_ref[...], preferred_element_type=f32)  # (TB*L, 2H)
    e_lin = fused[:, :H].reshape(TB, L, H)           # attention: WaS@st + WaD@dy
    e2_lin = fused[:, H:].reshape(TB, L, H)          # pointer:   WpS@st

    # --- encoder attention: softmax_L( v_a . tanh(Wa @ [static;dynamic;h]) ) ---
    h_bias = jnp.dot(h_new.astype(wah_ref.dtype), wah_ref[...],
                     preferred_element_type=f32)     # (TB, H)
    e = jnp.tanh(e_lin + h_bias[:, None, :])         # (TB, L, H)
    logits = jnp.sum(e * va_ref[...], axis=-1)       # (TB, L)
    m = jnp.max(logits, axis=-1, keepdims=True)
    p = jnp.exp(logits - m)
    attn = p / jnp.sum(p, axis=-1, keepdims=True)    # exact divide

    # context_b = sum_l attn[b,l] * static[b,l,:]  — batched MXU dot over L
    st = sd[:, :, :H]                                # (TB, L, H)
    context = jax.lax.dot_general(
        attn.astype(st.dtype)[:, None, :], st,
        dimension_numbers=(((2,), (1,)), ((0,), (0,))),
        preferred_element_type=f32)[:, 0, :]         # (TB, H) f32

    # --- pointer scores: v_p . tanh(Wp @ [static; context]) -------------------
    c_bias = jnp.dot(context.astype(wpc_ref.dtype), wpc_ref[...],
                     preferred_element_type=f32)     # (TB, H)
    e2 = jnp.tanh(e2_lin + c_bias[:, None, :])       # (TB, L, H)
    probs = jnp.sum(e2 * vp_ref[...], axis=-1)       # (TB, L)

    # --- lane-dense stores: pad last dim to 128 multiple, wrapper slices -----
    LP = probs_ref.shape[1]
    if LP > L:
        probs = jnp.concatenate(
            [probs, jnp.zeros((TB, LP - L), probs.dtype)], axis=-1)
    probs_ref[...] = probs.astype(probs_ref.dtype)

    HP = hh_ref.shape[1]
    hh_out = h_new
    if HP > H:
        hh_out = jnp.concatenate(
            [hh_out, jnp.zeros((TB, HP - H), hh_out.dtype)], axis=-1)
    hh_ref[...] = hh_out.astype(hh_ref.dtype)


# ------------------------------ JAX wrapper -------------------------------

def _round_up(a, m):
    return ((a + m - 1) // m) * m


def prepare_pointer_params(params, compute_dtype=jnp.float32):
    """One-time weight prep (do this once, outside the decode loop).

    compute_dtype: dtype of the MXU operands (jnp.float32, or jnp.bfloat16 on
    v6e/v7x).  Biases and v_a / v_p stay in f32 — the epilogue is always f32.
    """
    f32 = jnp.float32
    cdt = compute_dtype
    H = params["w_ih"].shape[1]
    W_attn = jnp.asarray(params["W_attn"], f32)      # (H, 3H)
    W_ptr = jnp.asarray(params["W_ptr"], f32)        # (H, 2H)
    waS_t = W_attn[:, :H].T                          # (H, H)
    waD_t = W_attn[:, H:2 * H].T                     # (H, H)
    waH_t = W_attn[:, 2 * H:].T                      # (H, H)
    wpS_t = W_ptr[:, :H].T                           # (H, H)
    wpC_t = W_ptr[:, H:].T                           # (H, H)
    # Fused encoder weight: rows 0:H consume the static half of the input,
    # rows H:2H the dynamic half; columns 0:H produce the attention
    # projection, columns H:2H the pointer projection.
    w_big = jnp.concatenate(
        [jnp.concatenate([waS_t, wpS_t], axis=1),
         jnp.concatenate([waD_t, jnp.zeros((H, H), f32)], axis=1)], axis=0)
    return dict(
        wih_t=jnp.asarray(params["w_ih"], f32).T.astype(cdt),   # (H, 3H), (r,z,n)
        whh_t=jnp.asarray(params["w_hh"], f32).T.astype(cdt),   # (H, 3H)
        bih=jnp.asarray(params["b_ih"], f32).reshape(1, 3 * H),
        bhh=jnp.asarray(params["b_hh"], f32).reshape(1, 3 * H),
        w_big=w_big.astype(cdt),                                # (2H, 2H)
        waH_t=waH_t.astype(cdt),                                # (H, H)
        wpC_t=wpC_t.astype(cdt),                                # (H, H)
        va=jnp.asarray(params["v_attn"], f32).reshape(1, H),
        vp=jnp.asarray(params["v_ptr"], f32).reshape(1, H),
    )


def prepare_pointer_static(static_hidden, compute_dtype=jnp.float32):
    """Hoisted out of the per-decode-step forward: static is constant across
    the autoregressive loop, so its transpose/cast is paid once.
    (B, H, L) -> (B, L, H), lane-dense in H."""
    return jnp.transpose(static_hidden, (0, 2, 1)).astype(compute_dtype)


@jax.jit
def pointer_forward(static_lh, dynamic_hidden, decoder_hidden, last_hh, prepped):
    """Returns (probs (B, L), last_hh (1, B, H)) — Pointer.forward in eval mode.

    static_lh      : (B, L, H)   output of prepare_pointer_static
    dynamic_hidden : (B, H, L)
    decoder_hidden : (B, H, 1)
    last_hh        : (1, B, H)
    """
    f32 = jnp.float32
    cdt = prepped["wih_t"].dtype
    B, L, H = static_lh.shape

    dy_lh = jnp.transpose(dynamic_hidden, (0, 2, 1)).astype(cdt)   # (B, L, H)
    sd = jnp.concatenate([static_lh.astype(cdt), dy_lh], axis=-1)  # (B, L, 2H)
    x = decoder_hidden[:, :, 0].astype(cdt)                        # (B, H)
    h0 = last_hh[0].astype(cdt)                                    # (B, H)

    # ---- batch blocking ----
    MAX_TB = 128
    if B <= 16:
        TB = B                                  # tiny batch: a split buys nothing
    else:
        # >= 2 grid steps so both v7x TensorCores get work; TB multiple of 8.
        TB = min(MAX_TB, _round_up(pl.cdiv(B, 2), 8))
    # Keep the double-buffered (TB, L, 2H) input stream well under v7x VMEM.
    itemsize = jnp.dtype(cdt).itemsize
    while TB > 8 and 2 * TB * L * 2 * H * itemsize > 24 * 1024 * 1024:
        TB //= 2
    Bp = _round_up(B, TB)
    if Bp != B:
        pad = Bp - B
        sd = jnp.pad(sd, ((0, pad), (0, 0), (0, 0)))
        x = jnp.pad(x, ((0, pad), (0, 0)))
        h0 = jnp.pad(h0, ((0, pad), (0, 0)))
    nb = Bp // TB

    # ---- lane-dense output slabs (sliced back below) ----
    LP = _round_up(L, 128)
    HP = _round_up(H, 128)

    per_b3 = lambda b: (b, 0, 0)
    per_b2 = lambda b: (b, 0)
    shared2 = lambda b: (0, 0)

    probs, hh = pl.pallas_call(
        pointer_kernel,
        out_shape=(jax.ShapeDtypeStruct((Bp, LP), f32),
                   jax.ShapeDtypeStruct((Bp, HP), f32)),
        grid=(nb,),
        in_specs=[
            pl.BlockSpec((TB, L, 2 * H), per_b3),    # [static ; dynamic]
            pl.BlockSpec((TB, H), per_b2),           # decoder input
            pl.BlockSpec((TB, H), per_b2),           # previous hidden
            pl.BlockSpec((H, 3 * H), shared2),       # W_ih^T
            pl.BlockSpec((H, 3 * H), shared2),       # W_hh^T
            pl.BlockSpec((1, 3 * H), shared2),       # b_ih
            pl.BlockSpec((1, 3 * H), shared2),       # b_hh
            pl.BlockSpec((2 * H, 2 * H), shared2),   # fused [[WaS^T,WpS^T],[WaD^T,0]]
            pl.BlockSpec((H, H), shared2),           # Wa_hidden^T
            pl.BlockSpec((H, H), shared2),           # Wp_context^T
            pl.BlockSpec((1, H), shared2),           # v_attn
            pl.BlockSpec((1, H), shared2),           # v_ptr
        ],
        out_specs=(pl.BlockSpec((TB, LP), per_b2),
                   pl.BlockSpec((TB, HP), per_b2)),
        compiler_params=pltpu.CompilerParams(
            dimension_semantics=("parallel",),
            vmem_limit_bytes=48 * 1024 * 1024),      # fits v7x's 64 MiB VMEM
    )(sd, x, h0,
      prepped["wih_t"], prepped["whh_t"], prepped["bih"], prepped["bhh"],
      prepped["w_big"], prepped["waH_t"], prepped["wpC_t"],
      prepped["va"], prepped["vp"])

    return probs[:B, :L], hh[:B, :H][None]


# --------------------------- pure-JAX reference ---------------------------

def pointer_reference(static, dynamic, dec, last_hh, params):
    B, H, L = static.shape
    x = dec[:, :, 0]                 # (B, H)
    h = last_hh[0]                   # (B, H)
    gi = x @ params["w_ih"].T + params["b_ih"]
    gh = h @ params["w_hh"].T + params["b_hh"]
    r = jax.nn.sigmoid(gi[:, :H] + gh[:, :H])
    z = jax.nn.sigmoid(gi[:, H:2 * H] + gh[:, H:2 * H])
    n = jnp.tanh(gi[:, 2 * H:] + r * gh[:, 2 * H:])
    hn = (1.0 - z) * n + z * h       # (B, H)

    hidden = jnp.concatenate(
        [static, dynamic, jnp.broadcast_to(hn[:, :, None], (B, H, L))], axis=1)
    e = jnp.tanh(jnp.einsum("hk,bkl->bhl", params["W_attn"], hidden))
    attn = jax.nn.softmax(jnp.einsum("h,bhl->bl", params["v_attn"], e), axis=-1)
    context = jnp.einsum("bl,bhl->bh", attn, static)
    energy = jnp.concatenate(
        [static, jnp.broadcast_to(context[:, :, None], (B, H, L))], axis=1)
    e2 = jnp.tanh(jnp.einsum("hk,bkl->bhl", params["W_ptr"], energy))
    probs = jnp.einsum("h,bhl->bl", params["v_ptr"], e2)
    return probs, hn[None]


# ---------------------------------- main ----------------------------------

if __name__ == "__main__":
    B, H, L = 2, 32, 8
    key = jax.random.PRNGKey(0)
    ks = jax.random.split(key, 12)

    # Deterministic synthetic parameters (module inits v/W to zeros; we use
    # small random values so the kernel actually exercises the math).
    params = {
        "w_ih": 0.1 * jax.random.normal(ks[0], (3 * H, H), jnp.float32),
        "w_hh": 0.1 * jax.random.normal(ks[1], (3 * H, H), jnp.float32),
        "b_ih": 0.1 * jax.random.normal(ks[2], (3 * H,), jnp.float32),
        "b_hh": 0.1 * jax.random.normal(ks[3], (3 * H,), jnp.float32),
        "v_attn": 0.1 * jax.random.normal(ks[4], (H,), jnp.float32),
        "W_attn": 0.1 * jax.random.normal(ks[5], (H, 3 * H), jnp.float32),
        "v_ptr": 0.1 * jax.random.normal(ks[6], (H,), jnp.float32),
        "W_ptr": 0.1 * jax.random.normal(ks[7], (H, 2 * H), jnp.float32),
    }

    static_hidden = jax.random.normal(ks[8], (B, H, L), jnp.float32)
    dynamic_hidden = jax.random.normal(ks[9], (B, H, L), jnp.float32)
    decoder_hidden = jax.random.normal(ks[10], (B, H, 1), jnp.float32)
    last_hh = jax.random.normal(ks[11], (1, B, H), jnp.float32)

    probs_ref, hh_ref = pointer_reference(static_hidden, dynamic_hidden,
                                          decoder_hidden, last_hh, params)

    # ---- f32 compute path (v5e-friendly, tight accuracy check) ----
    prepped_f32 = prepare_pointer_params(params, jnp.float32)
    static_lh_f32 = prepare_pointer_static(static_hidden, jnp.float32)
    probs, new_hh = pointer_forward(static_lh_f32, dynamic_hidden,
                                    decoder_hidden, last_hh, prepped_f32)
    jax.block_until_ready((probs, new_hh))
    np.testing.assert_allclose(np.asarray(probs), np.asarray(probs_ref),
                               rtol=1e-3, atol=1e-4)
    np.testing.assert_allclose(np.asarray(new_hh), np.asarray(hh_ref),
                               rtol=1e-4, atol=1e-5)

    # ---- bf16 MXU-operand path (v6e/v7x), f32 epilogue; loose smoke check ----
    prepped_bf16 = prepare_pointer_params(params, jnp.bfloat16)
    static_lh_bf16 = prepare_pointer_static(static_hidden, jnp.bfloat16)
    probs_b, new_hh_b = pointer_forward(static_lh_bf16, dynamic_hidden,
                                        decoder_hidden, last_hh, prepped_bf16)
    jax.block_until_ready((probs_b, new_hh_b))
    np.testing.assert_allclose(np.asarray(probs_b), np.asarray(probs_ref),
                               rtol=5e-2, atol=5e-2)
    np.testing.assert_allclose(np.asarray(new_hh_b), np.asarray(hh_ref),
                               rtol=5e-2, atol=5e-2)

    print("KERNEL_OK")
</pallas_src>

<mosaic_0001>
module attributes {stable_mosaic.version = 11 : i64} {
  func.func @pointer_kernel(%arg0: i32, %arg1: memref<2x8x64xf32, #tpu.memory_space<vmem>>, %arg2: memref<2x32xf32, #tpu.memory_space<vmem>>, %arg3: memref<2x32xf32, #tpu.memory_space<vmem>>, %arg4: memref<32x96xf32, #tpu.memory_space<vmem>>, %arg5: memref<32x96xf32, #tpu.memory_space<vmem>>, %arg6: memref<1x96xf32, #tpu.memory_space<vmem>>, %arg7: memref<1x96xf32, #tpu.memory_space<vmem>>, %arg8: memref<64x64xf32, #tpu.memory_space<vmem>>, %arg9: memref<32x32xf32, #tpu.memory_space<vmem>>, %arg10: memref<32x32xf32, #tpu.memory_space<vmem>>, %arg11: memref<1x32xf32, #tpu.memory_space<vmem>>, %arg12: memref<1x32xf32, #tpu.memory_space<vmem>>, %arg13: memref<2x128xf32, #tpu.memory_space<vmem>>, %arg14: memref<2x128xf32, #tpu.memory_space<vmem>>) attributes {dimension_semantics = [#tpu.dimension_semantics<parallel>], iteration_bounds = array<i64: 1>, scalar_prefetch = 0 : i64, scratch_operands = 0 : i64, tpu.core_type = #tpu.core_type<tc>, window_params = [{transform_indices = @transform_0, window_bounds = array<i64: 2, 8, 64>}, {transform_indices = @transform_1, window_bounds = array<i64: 2, 32>}, {transform_indices = @transform_2, window_bounds = array<i64: 2, 32>}, {pipeline_mode = #tpu.pipeline_mode<synchronous>, transform_indices = @transform_3, window_bounds = array<i64: 32, 96>}, {pipeline_mode = #tpu.pipeline_mode<synchronous>, transform_indices = @transform_4, window_bounds = array<i64: 32, 96>}, {pipeline_mode = #tpu.pipeline_mode<synchronous>, transform_indices = @transform_5, window_bounds = array<i64: 1, 96>}, {pipeline_mode = #tpu.pipeline_mode<synchronous>, transform_indices = @transform_6, window_bounds = array<i64: 1, 96>}, {pipeline_mode = #tpu.pipeline_mode<synchronous>, transform_indices = @transform_7, window_bounds = array<i64: 64, 64>}, {pipeline_mode = #tpu.pipeline_mode<synchronous>, transform_indices = @transform_8, window_bounds = array<i64: 32, 32>}, {pipeline_mode = #tpu.pipeline_mode<synchronous>, transform_indices = @transform_9, window_bounds = array<i64: 32, 32>}, {pipeline_mode = #tpu.pipeline_mode<synchronous>, transform_indices = @transform_10, window_bounds = array<i64: 1, 32>}, {pipeline_mode = #tpu.pipeline_mode<synchronous>, transform_indices = @transform_11, window_bounds = array<i64: 1, 32>}, {transform_indices = @transform_12, window_bounds = array<i64: 2, 128>}, {transform_indices = @transform_13, window_bounds = array<i64: 2, 128>}]} {
    %c0 = arith.constant 0 : index
    %c0_0 = arith.constant 0 : index
    %0 = vector.load %arg2[%c0, %c0_0] : memref<2x32xf32, #tpu.memory_space<vmem>>, vector<2x32xf32>
    %c0_1 = arith.constant 0 : index
    %c0_2 = arith.constant 0 : index
    %1 = vector.load %arg3[%c0_1, %c0_2] : memref<2x32xf32, #tpu.memory_space<vmem>>, vector<2x32xf32>
    %c0_3 = arith.constant 0 : index
    %c0_4 = arith.constant 0 : index
    %2 = vector.load %arg4[%c0_3, %c0_4] : memref<32x96xf32, #tpu.memory_space<vmem>>, vector<32x96xf32>
    %cst = arith.constant dense<0.000000e+00> : vector<2x96xf32>
    %3 = tpu.matmul %0, %2, %cst {dimension_numbers = #tpu.dot_dimension_numbers<[1], [0], [0], [1], [0, 0, 1, 1], [], []>} : vector<2x32xf32>, vector<32x96xf32>, vector<2x96xf32> -> vector<2x96xf32>
    %c0_5 = arith.constant 0 : index
    %c0_6 = arith.constant 0 : index
    %4 = vector.load %arg6[%c0_5, %c0_6] : memref<1x96xf32, #tpu.memory_space<vmem>>, vector<1x96xf32>
    %5 = vector.broadcast %4 : vector<1x96xf32> to vector<2x96xf32>
    %6 = arith.addf %3, %5 : vector<2x96xf32>
    %c0_7 = arith.constant 0 : index
    %c0_8 = arith.constant 0 : index
    %7 = vector.load %arg5[%c0_7, %c0_8] : memref<32x96xf32, #tpu.memory_space<vmem>>, vector<32x96xf32>
    %cst_9 = arith.constant dense<0.000000e+00> : vector<2x96xf32>
    %8 = tpu.matmul %1, %7, %cst_9 {dimension_numbers = #tpu.dot_dimension_numbers<[1], [0], [0], [1], [0, 0, 1, 1], [], []>} : vector<2x32xf32>, vector<32x96xf32>, vector<2x96xf32> -> vector<2x96xf32>
    %c0_10 = arith.constant 0 : index
    %c0_11 = arith.constant 0 : index
    %9 = vector.load %arg7[%c0_10, %c0_11] : memref<1x96xf32, #tpu.memory_space<vmem>>, vector<1x96xf32>
    %10 = vector.broadcast %9 : vector<1x96xf32> to vector<2x96xf32>
    %11 = arith.addf %8, %10 : vector<2x96xf32>
    %12 = vector.extract_strided_slice %6 {offsets = [0, 0], sizes = [2, 32], strides = [1, 1]} : vector<2x96xf32> to vector<2x32xf32>
    %13 = vector.extract_strided_slice %11 {offsets = [0, 0], sizes = [2, 32], strides = [1, 1]} : vector<2x96xf32> to vector<2x32xf32>
    %14 = arith.addf %12, %13 : vector<2x32xf32>
    %15 = arith.negf %14 : vector<2x32xf32>
    %16 = math.exp %15 : vector<2x32xf32>
    %cst_12 = arith.constant 1.000000e+00 : f32
    %17 = vector.broadcast %cst_12 : f32 to vector<2x32xf32>
    %18 = arith.addf %17, %16 : vector<2x32xf32>
    %19 = arith.divf %17, %18 : vector<2x32xf32>
    %20 = vector.extract_strided_slice %6 {offsets = [0, 32], sizes = [2, 32], strides = [1, 1]} : vector<2x96xf32> to vector<2x32xf32>
    %21 = vector.extract_strided_slice %11 {offsets = [0, 32], sizes = [2, 32], strides = [1, 1]} : vector<2x96xf32> to vector<2x32xf32>
    %22 = arith.addf %20, %21 : vector<2x32xf32>
    %23 = arith.negf %22 : vector<2x32xf32>
    %24 = math.exp %23 : vector<2x32xf32>
    %cst_13 = arith.constant 1.000000e+00 : f32
    %25 = vector.broadcast %cst_13 : f32 to vector<2x32xf32>
    %26 = arith.addf %25, %24 : vector<2x32xf32>
    %27 = arith.divf %25, %26 : vector<2x32xf32>
    %28 = vector.extract_strided_slice %6 {offsets = [0, 64], sizes = [2, 32], strides = [1, 1]} : vector<2x96xf32> to vector<2x32xf32>
    %29 = vector.extract_strided_slice %11 {offsets = [0, 64], sizes = [2, 32], strides = [1, 1]} : vector<2x96xf32> to vector<2x32xf32>
    %30 = arith.mulf %19, %29 : vector<2x32xf32>
    %31 = arith.addf %28, %30 : vector<2x32xf32>
    %32 = math.tanh %31 : vector<2x32xf32>
    %cst_14 = arith.constant 1.000000e+00 : f32
    %33 = vector.broadcast %cst_14 : f32 to vector<2x32xf32>
    %34 = arith.subf %33, %27 : vector<2x32xf32>
    %35 = arith.mulf %34, %32 : vector<2x32xf32>
    %36 = arith.mulf %27, %1 : vector<2x32xf32>
    %37 = arith.addf %35, %36 : vector<2x32xf32>
    %c0_15 = arith.constant 0 : index
    %c0_16 = arith.constant 0 : index
    %c0_17 = arith.constant 0 : index
    %38 = vector.load %arg1[%c0_15, %c0_16, %c0_17] : memref<2x8x64xf32, #tpu.memory_space<vmem>>, vector<2x8x64xf32>
    %39 = vector.shape_cast %38 : vector<2x8x64xf32> to vector<16x64xf32>
    %c0_18 = arith.constant 0 : index
    %c0_19 = arith.constant 0 : index
    %40 = vector.load %arg8[%c0_18, %c0_19] : memref<64x64xf32, #tpu.memory_space<vmem>>, vector<64x64xf32>
    %cst_20 = arith.constant dense<0.000000e+00> : vector<16x64xf32>
    %41 = tpu.matmul %39, %40, %cst_20 {dimension_numbers = #tpu.dot_dimension_numbers<[1], [0], [0], [1], [0, 0, 1, 1], [], []>} : vector<16x64xf32>, vector<64x64xf32>, vector<16x64xf32> -> vector<16x64xf32>
    %42 = vector.extract_strided_slice %41 {offsets = [0, 0], sizes = [16, 32], strides = [1, 1]} : vector<16x64xf32> to vector<16x32xf32>
    %43 = vector.shape_cast %42 : vector<16x32xf32> to vector<2x8x32xf32>
    %44 = vector.extract_strided_slice %41 {offsets = [0, 32], sizes = [16, 32], strides = [1, 1]} : vector<16x64xf32> to vector<16x32xf32>
    %45 = vector.shape_cast %44 : vector<16x32xf32> to vector<2x8x32xf32>
    %c0_21 = arith.constant 0 : index
    %c0_22 = arith.constant 0 : index
    %46 = vector.load %arg9[%c0_21, %c0_22] : memref<32x32xf32, #tpu.memory_space<vmem>>, vector<32x32xf32>
    %cst_23 = arith.constant dense<0.000000e+00> : vector<2x32xf32>
    %47 = tpu.matmul %37, %46, %cst_23 {dimension_numbers = #tpu.dot_dimension_numbers<[1], [0], [0], [1], [0, 0, 1, 1], [], []>} : vector<2x32xf32>, vector<32x32xf32>, vector<2x32xf32> -> vector<2x32xf32>
    %48 = vector.shape_cast %47 : vector<2x32xf32> to vector<2x1x32xf32>
    %49 = vector.broadcast %48 : vector<2x1x32xf32> to vector<2x8x32xf32>
    %50 = arith.addf %43, %49 : vector<2x8x32xf32>
    %51 = math.tanh %50 : vector<2x8x32xf32>
    %c0_24 = arith.constant 0 : index
    %c0_25 = arith.constant 0 : index
    %52 = vector.load %arg11[%c0_24, %c0_25] : memref<1x32xf32, #tpu.memory_space<vmem>>, vector<1x32xf32>
    %53 = vector.shape_cast %52 : vector<1x32xf32> to vector<1x1x32xf32>
    %54 = vector.broadcast %53 : vector<1x1x32xf32> to vector<2x8x32xf32>
    %55 = arith.mulf %51, %54 : vector<2x8x32xf32>
    %cst_26 = arith.constant dense<0.000000e+00> : vector<2x8xf32>
    %56 = vector.multi_reduction <add>, %55, %cst_26 [2] : vector<2x8x32xf32> to vector<2x8xf32>
    %cst_27 = arith.constant dense<0xFF800000> : vector<2xf32>
    %57 = vector.multi_reduction <maximumf>, %56, %cst_27 [1] : vector<2x8xf32> to vector<2xf32>
    %58 = vector.shape_cast %57 : vector<2xf32> to vector<2x1xf32>
    %59 = vector.broadcast %58 : vector<2x1xf32> to vector<2x8xf32>
    %60 = arith.subf %56, %59 : vector<2x8xf32>
    %61 = math.exp %60 : vector<2x8xf32>
    %cst_28 = arith.constant dense<0.000000e+00> : vector<2xf32>
    %62 = vector.multi_reduction <add>, %61, %cst_28 [1] : vector<2x8xf32> to vector<2xf32>
    %63 = vector.shape_cast %62 : vector<2xf32> to vector<2x1xf32>
    %64 = vector.broadcast %63 : vector<2x1xf32> to vector<2x8xf32>
    %65 = arith.divf %61, %64 : vector<2x8xf32>
    %66 = vector.extract_strided_slice %38 {offsets = [0, 0, 0], sizes = [2, 8, 32], strides = [1, 1, 1]} : vector<2x8x64xf32> to vector<2x8x32xf32>
    %67 = vector.shape_cast %65 : vector<2x8xf32> to vector<2x1x8xf32>
    %cst_29 = arith.constant dense<0.000000e+00> : vector<2x1x32xf32>
    %68 = tpu.matmul %67, %66, %cst_29 {dimension_numbers = #tpu.dot_dimension_numbers<[2], [1], [1], [2], [0, 0, 0, 1, 1, 2], [0], [0]>} : vector<2x1x8xf32>, vector<2x8x32xf32>, vector<2x1x32xf32> -> vector<2x1x32xf32>
    %69 = vector.shape_cast %68 : vector<2x1x32xf32> to vector<2x32xf32>
    %c0_30 = arith.constant 0 : index
    %c0_31 = arith.constant 0 : index
    %70 = vector.load %arg10[%c0_30, %c0_31] : memref<32x32xf32, #tpu.memory_space<vmem>>, vector<32x32xf32>
    %cst_32 = arith.constant dense<0.000000e+00> : vector<2x32xf32>
    %71 = tpu.matmul %69, %70, %cst_32 {dimension_numbers = #tpu.dot_dimension_numbers<[1], [0], [0], [1], [0, 0, 1, 1], [], []>} : vector<2x32xf32>, vector<32x32xf32>, vector<2x32xf32> -> vector<2x32xf32>
    %72 = vector.shape_cast %71 : vector<2x32xf32> to vector<2x1x32xf32>
    %73 = vector.broadcast %72 : vector<2x1x32xf32> to vector<2x8x32xf32>
    %74 = arith.addf %45, %73 : vector<2x8x32xf32>
    %75 = math.tanh %74 : vector<2x8x32xf32>
    %c0_33 = arith.constant 0 : index
    %c0_34 = arith.constant 0 : index
    %76 = vector.load %arg12[%c0_33, %c0_34] : memref<1x32xf32, #tpu.memory_space<vmem>>, vector<1x32xf32>
    %77 = vector.shape_cast %76 : vector<1x32xf32> to vector<1x1x32xf32>
    %78 = vector.broadcast %77 : vector<1x1x32xf32> to vector<2x8x32xf32>
    %79 = arith.mulf %75, %78 : vector<2x8x32xf32>
    %cst_35 = arith.constant dense<0.000000e+00> : vector<2x8xf32>
    %80 = vector.multi_reduction <add>, %79, %cst_35 [2] : vector<2x8x32xf32> to vector<2x8xf32>
    %cst_36 = arith.constant 0.000000e+00 : f32
    %81 = vector.broadcast %cst_36 : f32 to vector<2x120xf32>
    %82 = tpu.concatenate %80, %81 in 1 : vector<2x8xf32>, vector<2x120xf32> -> vector<2x128xf32>
    %c0_37 = arith.constant 0 : index
    %c0_38 = arith.constant 0 : index
    %83 = vector.load %arg13[%c0_37, %c0_38] : memref<2x128xf32, #tpu.memory_space<vmem>>, vector<2x128xf32>
    tpu.vector_store %arg13[%c0_37, %c0_38], %82 {strides = array<i32>} : memref<2x128xf32, #tpu.memory_space<vmem>>, vector<2x128xf32>,
    %cst_39 = arith.constant 0.000000e+00 : f32
    %84 = vector.broadcast %cst_39 : f32 to vector<2x96xf32>
    %85 = tpu.concatenate %37, %84 in 1 : vector<2x32xf32>, vector<2x96xf32> -> vector<2x128xf32>
    %c0_40 = arith.constant 0 : index
    %c0_41 = arith.constant 0 : index
    %86 = vector.load %arg14[%c0_40, %c0_41] : memref<2x128xf32, #tpu.memory_space<vmem>>, vector<2x128xf32>
    tpu.vector_store %arg14[%c0_40, %c0_41], %85 {strides = array<i32>} : memref<2x128xf32, #tpu.memory_space<vmem>>, vector<2x128xf32>,
    return
  }
  func.func @transform_0(%arg0: i32) -> (i32, i32, i32) {
    %c0_i32 = arith.constant 0 : i32
    %c0_i32_0 = arith.constant 0 : i32
    %c0_i32_1 = arith.constant 0 : i32
    return %arg0, %c0_i32, %c0_i32_0 : i32, i32, i32
  }
  func.func @transform_1(%arg0: i32) -> (i32, i32) {
    %c0_i32 = arith.constant 0 : i32
    %c0_i32_0 = arith.constant 0 : i32
    return %arg0, %c0_i32 : i32, i32
  }
  func.func @transform_2(%arg0: i32) -> (i32, i32) {
    %c0_i32 = arith.constant 0 : i32
    %c0_i32_0 = arith.constant 0 : i32
    return %arg0, %c0_i32 : i32, i32
  }
  func.func @transform_3(%arg0: i32) -> (i32, i32) {
    %c0_i32 = arith.constant 0 : i32
    %c0_i32_0 = arith.constant 0 : i32
    %c0_i32_1 = arith.constant 0 : i32
    return %c0_i32, %c0_i32_0 : i32, i32
  }
  func.func @transform_4(%arg0: i32) -> (i32, i32) {
    %c0_i32 = arith.constant 0 : i32
    %c0_i32_0 = arith.constant 0 : i32
    %c0_i32_1 = arith.constant 0 : i32
    return %c0_i32, %c0_i32_0 : i32, i32
  }
  func.func @transform_5(%arg0: i32) -> (i32, i32) {
    %c0_i32 = arith.constant 0 : i32
    %c0_i32_0 = arith.constant 0 : i32
    %c0_i32_1 = arith.constant 0 : i32
    return %c0_i32, %c0_i32_0 : i32, i32
  }
  func.func @transform_6(%arg0: i32) -> (i32, i32) {
    %c0_i32 = arith.constant 0 : i32
    %c0_i32_0 = arith.constant 0 : i32
    %c0_i32_1 = arith.constant 0 : i32
    return %c0_i32, %c0_i32_0 : i32, i32
  }
  func.func @transform_7(%arg0: i32) -> (i32, i32) {
    %c0_i32 = arith.constant 0 : i32
    %c0_i32_0 = arith.constant 0 : i32
    %c0_i32_1 = arith.constant 0 : i32
    return %c0_i32, %c0_i32_0 : i32, i32
  }
  func.func @transform_8(%arg0: i32) -> (i32, i32) {
    %c0_i32 = arith.constant 0 : i32
    %c0_i32_0 = arith.constant 0 : i32
    %c0_i32_1 = arith.constant 0 : i32
    return %c0_i32, %c0_i32_0 : i32, i32
  }
  func.func @transform_9(%arg0: i32) -> (i32, i32) {
    %c0_i32 = arith.constant 0 : i32
    %c0_i32_0 = arith.constant 0 : i32
    %c0_i32_1 = arith.constant 0 : i32
    return %c0_i32, %c0_i32_0 : i32, i32
  }
  func.func @transform_10(%arg0: i32) -> (i32, i32) {
    %c0_i32 = arith.constant 0 : i32
    %c0_i32_0 = arith.constant 0 : i32
    %c0_i32_1 = arith.constant 0 : i32
    return %c0_i32, %c0_i32_0 : i32, i32
  }
  func.func @transform_11(%arg0: i32) -> (i32, i32) {
    %c0_i32 = arith.constant 0 : i32
    %c0_i32_0 = arith.constant 0 : i32
    %c0_i32_1 = arith.constant 0 : i32
    return %c0_i32, %c0_i32_0 : i32, i32
  }
  func.func @transform_12(%arg0: i32) -> (i32, i32) {
    %c0_i32 = arith.constant 0 : i32
    %c0_i32_0 = arith.constant 0 : i32
    return %arg0, %c0_i32 : i32, i32
  }
  func.func @transform_13(%arg0: i32) -> (i32, i32) {
    %c0_i32 = arith.constant 0 : i32
    %c0_i32_0 = arith.constant 0 : i32
    return %arg0, %c0_i32 : i32, i32
  }
}

</mosaic_0001>

<llo_original>
// kernel: pointer_forward.1
$region0: #{pointer_forward.1}
  #allocation0 [shape = 'u32[]', space=smem, size = 0x4, offset = 0x4, fixed_abs, tag = 'smem constant byte address 0x4 - core index']
  #allocation1 [shape = 'u32[144,128]{1,0:T(1,128)}', space=vmem, size = 0x12000, scoped, tag = 'internal scratch']
  %s0 = inlined_call_operand.vmem [shape: f32[2,8,64], index: 0, kind: input, shape index: {}]
  %s1 = inlined_call_operand.hbm [shape: f32[2,32], index: 1, kind: input, shape index: {}]
  %s2 = inlined_call_operand.hbm [shape: f32[2,32], index: 2, kind: input, shape index: {}]
  %s3 = inlined_call_operand.vmem [shape: f32[32,96], index: 3, kind: input, shape index: {}]
  %s4 = inlined_call_operand.hbm [shape: f32[32,96], index: 4, kind: input, shape index: {}]
  %s5 = inlined_call_operand.vmem [shape: f32[1,96], index: 5, kind: input, shape index: {}]
  %s6 = inlined_call_operand.hbm [shape: f32[1,96], index: 6, kind: input, shape index: {}]
  %s7 = inlined_call_operand.vmem [shape: f32[64,64], index: 7, kind: input, shape index: {}]
  %s8 = inlined_call_operand.hbm [shape: f32[32,32], index: 8, kind: input, shape index: {}]
  %s9 = inlined_call_operand.hbm [shape: f32[32,32], index: 9, kind: input, shape index: {}]
  %s10 = inlined_call_operand.hbm [shape: f32[1,32], index: 10, kind: input, shape index: {}]
  %s11 = inlined_call_operand.hbm [shape: f32[1,32], index: 11, kind: input, shape index: {}]
  %s12 = inlined_call_operand.hbm [shape: f32[2,128], index: 12, kind: output, shape index: {0}]
  %s13 = inlined_call_operand.vmem [shape: f32[2,128], index: 13, kind: output, shape index: {1}]
  %14 = xla_tuple %s12, %s13
  %s15 = sld [smem:[#allocation0]]
  $region98: #{pointer_forward.1} parent=0
    _
  %s17 = ssub.s32 1, %s15
  %s18 = scalar_select 0, %s17, %s15
  $region1: #{pointer_forward.1} parent=0
    #allocation2 [shape = 'u8[1024]{0}', space=vmem, size = 0x400, scoped, tag = 'input window, operand 1, single buffered']
    #allocation3 [shape = 's32[1]{0}', space=sflag, size = 0x4, scoped, tag = 'scoped memory for pointer_forward.1']
    #allocation4 [shape = 's32[1]{0}', space=sflag, size = 0x4, scoped, tag = 'scoped memory for pointer_forward.1']
    #allocation5 [shape = 'u8[1024]{0}', space=vmem, size = 0x400, scoped, tag = 'input window, operand 2, single buffered']
    #allocation6 [shape = 's32[1]{0}', space=sflag, size = 0x4, scoped, tag = 'scoped memory for pointer_forward.1']
    #allocation7 [shape = 'u8[16384]{0}', space=vmem, size = 0x4000, scoped, tag = 'input window, operand 4, single buffered']
    #allocation8 [shape = 'u8[512]{0}', space=vmem, size = 0x400, scoped, tag = 'input window, operand 6, single buffered']
    #allocation9 [shape = 's32[1]{0}', space=sflag, size = 0x4, scoped, tag = 'scoped memory for pointer_forward.1']
    #allocation10 [shape = 'u8[16384]{0}', space=vmem, size = 0x4000, scoped, tag = 'input window, operand 8, single buffered']
    #allocation11 [shape = 'u8[16384]{0}', space=vmem, size = 0x4000, scoped, tag = 'input window, operand 9, single buffered']
    #allocation12 [shape = 's32[1]{0}', space=sflag, size = 0x4, scoped, tag = 'scoped memory for pointer_forward.1']
    #allocation13 [shape = 'u8[512]{0}', space=vmem, size = 0x400, scoped, tag = 'input window, operand 10, single buffered']
    #allocation14 [shape = 'u8[512]{0}', space=vmem, size = 0x400, scoped, tag = 'input window, operand 11, single buffered']
    #allocation15 [shape = 's32[1]{0}', space=sflag, size = 0x4, scoped, tag = 'scoped memory for pointer_forward.1']
    #allocation16 [shape = 'u8[1024]{0}', space=vmem, size = 0x400, scoped, tag = 'output window, operand 0, single buffered']
    %19 = vsyncpa [#allocation3], 0
    %20 = vsyncpa [#allocation6], 0
    %21 = vsyncpa [#allocation9], 0
    %22 = vsyncpa [#allocation12], 0
    %23 = vsyncpa [#allocation15], 0
    %24 = vsyncpa [#allocation4], 0
    // Predicated region
    $region2: #{pointer_forward.1} parent=1 // pred_check
      _
    $region3: #{pointer_forward.1} parent=1 // pred_check_branch
      %26 = sbr.rel (0) target = $region5
    $region4: #{pointer_forward.1} parent=1 // pred_region
      _
    $region5: #{pointer_forward.1} parent=1 // pred_fallthru
      _
    // Predicated region
    $region6: #{pointer_forward.1} parent=1 // pred_check
      _
    $region7: #{pointer_forward.1} parent=1 // pred_check_branch
      %28 = sbr.rel (0) target = $region9
    $region8: #{pointer_forward.1} parent=1 // pred_region
      %s30 = ssub.s32 32, 32
      %31 = vsyncadd [#allocation3], %s30
      %s33 = sshll.u32 [#allocation2], 4
      %s34 = int_to_ptr.vmem [resolvable:$true] %s33
      %36 = dma.hbm_to_vmem [thread:$0]  %s1, 32, %s34, [#allocation3]
    $region9: #{pointer_forward.1} parent=1 // pred_fallthru
      _
    // Predicated region
    $region10: #{pointer_forward.1} parent=1 // pred_check
      _
    $region11: #{pointer_forward.1} parent=1 // pred_check_branch
      %38 = sbr.rel (0) target = $region13
    $region12: #{pointer_forward.1} parent=1 // pred_region
      %s40 = ssub.s32 32, 32
      %41 = vsyncadd [#allocation6], %s40
      %s43 = sshll.u32 [#allocation5], 4
      %s44 = int_to_ptr.vmem [resolvable:$true] %s43
      %46 = dma.hbm_to_vmem [thread:$0]  %s2, 32, %s44, [#allocation6]
    $region13: #{pointer_forward.1} parent=1 // pred_fallthru
      _
    // Predicated region
    $region14: #{pointer_forward.1} parent=1 // pred_check
      _
    $region15: #{pointer_forward.1} parent=1 // pred_check_branch
      %48 = sbr.rel (0) target = $region17
    $region16: #{pointer_forward.1} parent=1 // pred_region
      _
    $region17: #{pointer_forward.1} parent=1 // pred_fallthru
      _
    // Predicated region
    $region18: #{pointer_forward.1} parent=1 // pred_check
      _
    $region19: #{pointer_forward.1} parent=1 // pred_check_branch
      %50 = sbr.rel (0) target = $region21
    $region20: #{pointer_forward.1} parent=1 // pred_region
      %s52 = ssub.s32 512, 512
      %53 = vsyncadd [#allocation6], %s52
      %s54 = sshll.u32 [#allocation7], 4
      %s55 = int_to_ptr.vmem [resolvable:$true] %s54
      %60 = dma.hbm_to_vmem [thread:$0]  %s4, 512, %s55, [#allocation6], 128, 128, 8
    $region21: #{pointer_forward.1} parent=1 // pred_fallthru
      _
    // Predicated region
    $region22: #{pointer_forward.1} parent=1 // pred_check
      _
    $region23: #{pointer_forward.1} parent=1 // pred_check_branch
      %62 = sbr.rel (0) target = $region25
    $region24: #{pointer_forward.1} parent=1 // pred_region
      _
    $region25: #{pointer_forward.1} parent=1 // pred_fallthru
      _
    // Predicated region
    $region26: #{pointer_forward.1} parent=1 // pred_check
      _
    $region27: #{pointer_forward.1} parent=1 // pred_check_branch
      %64 = sbr.rel (0) target = $region29
    $region28: #{pointer_forward.1} parent=1 // pred_region
      %s66 = ssub.s32 16, 16
      %67 = vsyncadd [#allocation9], %s66
      %s69 = sshll.u32 [#allocation8], 4
      %s70 = int_to_ptr.vmem [resolvable:$true] %s69
      %72 = dma.hbm_to_vmem [thread:$0]  %s6, 16, %s70, [#allocation9]
    $region29: #{pointer_forward.1} parent=1 // pred_fallthru
      _
    // Predicated region
    $region30: #{pointer_forward.1} parent=1 // pred_check
      _
    $region31: #{pointer_forward.1} parent=1 // pred_check_branch
      %74 = sbr.rel (0) target = $region33
    $region32: #{pointer_forward.1} parent=1 // pred_region
      _
    $region33: #{pointer_forward.1} parent=1 // pred_fallthru
      _
    // Predicated region
    $region34: #{pointer_forward.1} parent=1 // pred_check
      _
    $region35: #{pointer_forward.1} parent=1 // pred_check_branch
      %76 = sbr.rel (0) target = $region37
    $region36: #{pointer_forward.1} parent=1 // pred_region
      %s78 = ssub.s32 512, 512
      %79 = vsyncadd [#allocation9], %s78
      %s80 = sshll.u32 [#allocation10], 4
      %s81 = int_to_ptr.vmem [resolvable:$true] %s80
      %86 = dma.hbm_to_vmem [thread:$0]  %s8, 512, %s81, [#allocation9], 128, 128, 8
    $region37: #{pointer_forward.1} parent=1 // pred_fallthru
      _
    // Predicated region
    $region38: #{pointer_forward.1} parent=1 // pred_check
      _
    $region39: #{pointer_forward.1} parent=1 // pred_check_branch
      %88 = sbr.rel (0) target = $region41
    $region40: #{pointer_forward.1} parent=1 // pred_region
      %s90 = ssub.s32 512, 512
      %91 = vsyncadd [#allocation12], %s90
      %s92 = sshll.u32 [#allocation11], 4
      %s93 = int_to_ptr.vmem [resolvable:$true] %s92
      %98 = dma.hbm_to_vmem [thread:$0]  %s9, 512, %s93, [#allocation12], 128, 128, 8
    $region41: #{pointer_forward.1} parent=1 // pred_fallthru
      _
    // Predicated region
    $region42: #{pointer_forward.1} parent=1 // pred_check
      _
    $region43: #{pointer_forward.1} parent=1 // pred_check_branch
      %100 = sbr.rel (0) target = $region45
    $region44: #{pointer_forward.1} parent=1 // pred_region
      %s102 = ssub.s32 16, 16
      %103 = vsyncadd [#allocation12], %s102
      %s105 = sshll.u32 [#allocation13], 4
      %s106 = int_to_ptr.vmem [resolvable:$true] %s105
      %108 = dma.hbm_to_vmem [thread:$0]  %s10, 16, %s106, [#allocation12]
    $region45: #{pointer_forward.1} parent=1 // pred_fallthru
      _
    // Predicated region
    $region46: #{pointer_forward.1} parent=1 // pred_check
      _
    $region47: #{pointer_forward.1} parent=1 // pred_check_branch
      %110 = sbr.rel (0) target = $region49
    $region48: #{pointer_forward.1} parent=1 // pred_region
      %s112 = ssub.s32 16, 16
      %113 = vsyncadd [#allocation15], %s112
      %s115 = sshll.u32 [#allocation14], 4
      %s116 = int_to_ptr.vmem [resolvable:$true] %s115
      %118 = dma.hbm_to_vmem [thread:$0]  %s11, 16, %s116, [#allocation15]
    $region49: #{pointer_forward.1} parent=1 // pred_fallthru
      _
    // Predicated region
    $region50: #{pointer_forward.1} parent=1 // pred_check
      _
    $region51: #{pointer_forward.1} parent=1 // pred_check_branch
      %120 = sbr.rel (0) target = $region53
    $region52: #{pointer_forward.1} parent=1 // pred_region
      %121 = dma.done [#allocation3], 32
    $region53: #{pointer_forward.1} parent=1 // pred_fallthru
      _
    // Predicated region
    $region54: #{pointer_forward.1} parent=1 // pred_check
      _
    $region55: #{pointer_forward.1} parent=1 // pred_check_branch
      %123 = sbr.rel (0) target = $region57
    $region56: #{pointer_forward.1} parent=1 // pred_region
      %124 = dma.done [#allocation6], 32
    $region57: #{pointer_forward.1} parent=1 // pred_fallthru
      _
    // Predicated region
    $region58: #{pointer_forward.1} parent=1 // pred_check
      _
    $region59: #{pointer_forward.1} parent=1 // pred_check_branch
      %126 = sbr.rel (0) target = $region61
    $region60: #{pointer_forward.1} parent=1 // pred_region
      %127 = dma.done [#allocation6], 512
    $region61: #{pointer_forward.1} parent=1 // pred_fallthru
      _
    // Predicated region
    $region62: #{pointer_forward.1} parent=1 // pred_check
      _
    $region63: #{pointer_forward.1} parent=1 // pred_check_branch
      %129 = sbr.rel (0) target = $region65
    $region64: #{pointer_forward.1} parent=1 // pred_region
      %130 = dma.done [#allocation9], 16
    $region65: #{pointer_forward.1} parent=1 // pred_fallthru
      _
    // Predicated region
    $region66: #{pointer_forward.1} parent=1 // pred_check
      _
    $region67: #{pointer_forward.1} parent=1 // pred_check_branch
      %132 = sbr.rel (0) target = $region69
    $region68: #{pointer_forward.1} parent=1 // pred_region
      %133 = dma.done [#allocation9], 512
    $region69: #{pointer_forward.1} parent=1 // pred_fallthru
      _
    // Predicated region
    $region70: #{pointer_forward.1} parent=1 // pred_check
      _
    $region71: #{pointer_forward.1} parent=1 // pred_check_branch
      %135 = sbr.rel (0) target = $region73
    $region72: #{pointer_forward.1} parent=1 // pred_region
      %136 = dma.done [#allocation12], 512
    $region73: #{pointer_forward.1} parent=1 // pred_fallthru
      _
    // Predicated region
    $region74: #{pointer_forward.1} parent=1 // pred_check
      _
    $region75: #{pointer_forward.1} parent=1 // pred_check_branch
      %138 = sbr.rel (0) target = $region77
    $region76: #{pointer_forward.1} parent=1 // pred_region
      %139 = dma.done [#allocation12], 16
    $region77: #{pointer_forward.1} parent=1 // pred_fallthru
      _
    // Predicated region
    $region78: #{pointer_forward.1} parent=1 // pred_check
      _
    $region79: #{pointer_forward.1} parent=1 // pred_check_branch
      %141 = sbr.rel (0) target = $region81
    $region80: #{pointer_forward.1} parent=1 // pred_region
      %142 = dma.done [#allocation15], 16
    $region81: #{pointer_forward.1} parent=1 // pred_fallthru
      _
    %v143 = vld [vmem:[#allocation2] sm:$0x3]
    %v144 = vld [vmem:[#allocation5] sm:$0x3]
    %v145 = vld [vmem:[%s3] sm:$0xff]
    %v146 = vld [vmem:[%s3 + $0x8] sm:$0xff]
    %v147 = vld [vmem:[%s3 + $0x10] sm:$0xff]
    %v148 = vld [vmem:[%s3 + $0x18] sm:$0xff]
    %v149 = vld [vmem:[%s5] sm:$0x1]
    %v151 = vlaneseq
    %v152 = vshrl.u32 %v151, 7
    %v153 = vsub.s32 0, %v152
    %v154 = vrot.slane %v149, %v153
    %vm156 = vcmask 261120
    %v158 = vsel %vm156, %v143, 0
    %160 = vmatprep.subr.mxu0 0.0
    %161 = vmatpush1.msra.mxu0 %v145
    %162 = vmatprep.subr.mxu0 0.0
    %163 = vmatpush1.msra.mxu0 %v146
    %164 = vmatprep.subr.mxu0 0.0
    %165 = vmatpush1.msra.mxu0 %v147
    %166 = vmatprep.subr.mxu0 0.0
    %167 = vmatpush1.msra.mxu0 %v148
    %168 = vmatprep.subr.mxu0 0.0
    %169 = vmatpush1.msra.mxu0 0.0
    %170 = vmatprep.subr.mxu0 0.0
    %171 = vmatpush1.msra.mxu0 0.0
    %172 = vmatprep.subr.mxu0 0.0
    %173 = vmatpush1.msra.mxu0 0.0
    %174 = vmatprep.subr.mxu0 0.0
    %175 = vmatpush1.msra.mxu0 0.0
    %176 = vmatprep.subr.mxu0 0.0
    %177 = vmatpush1.msra.mxu0 0.0
    %178 = vmatprep.subr.mxu0 0.0
    %179 = vmatpush1.msra.mxu0 0.0
    %180 = vmatprep.subr.mxu0 0.0
    %181 = vmatpush1.msra.mxu0 0.0
    %182 = vmatprep.subr.mxu0 0.0
    %183 = vmatpush1.msra.mxu0 0.0
    %184 = vmatprep.subr.mxu0 0.0
    %185 = vmatpush1.msra.mxu0 0.0
    %186 = vmatprep.subr.mxu0 0.0
    %187 = vmatpush1.msra.mxu0 0.0
    %188 = vmatprep.subr.mxu0 0.0
    %189 = vmatpush1.msra.mxu0 0.0
    %190 = vmatprep.subr.mxu0 0.0
    %191 = vmatpush1.msra.mxu0 0.0
    %192 = vmatprep.subr.mxu0 0.0
    %193 = vmatpush1.msra.mxu0 0.0
    %194 = vmatprep.subr.mxu0 0.0
    %195 = vmatpush1.msra.mxu0 0.0
    %196 = vmatprep.subr.mxu0 0.0
    %197 = vmatpush1.msra.mxu0 0.0
    %198 = vmatprep.subr.mxu0 0.0
    %199 = vmatpush1.msra.mxu0 0.0
    %200 = vmatprep.subr.mxu0 0.0
    %201 = vmatpush1.msra.mxu0 0.0
    %202 = vmatprep.subr.mxu0 0.0
    %203 = vmatpush1.msra.mxu0 0.0
    %204 = vmatprep.subr.mxu0 0.0
    %205 = vmatpush1.msra.mxu0 0.0
    %206 = vmatprep.subr.mxu0 0.0
    %207 = vmatpush1.msra.mxu0 0.0
    %208 = vmatprep.subr.mxu0 0.0
    %209 = vmatpush1.msra.mxu0 0.0
    %210 = vmatprep.subr.mxu0 0.0
    %211 = vmatpush1.msra.mxu0 0.0
    %212 = vmatprep.subr.mxu0 0.0
    %213 = vmatpush1.msra.mxu0 0.0
    %214 = vmatprep.subr.mxu0 0.0
    %215 = vmatpush1.msra.mxu0 0.0
    %216 = vmatprep.subr.mxu0 0.0
    %217 = vmatpush1.msra.mxu0 0.0
    %218 = vmatprep.subr.mxu0 0.0
    %219 = vmatpush1.msra.mxu0 0.0
    %220 = vmatprep.subr.mxu0 0.0
    %221 = vmatpush1.msra.mxu0 0.0
    %222 = vmatprep.subr.mxu0 0.0
    %223 = vmatpush1.msra.mxu0 0.0
    %224 = vmatprep.mubr.f32.mxu0 0.0
    %225 = vmatmul.mubr.f32.gmra.mrb[0].mxu0 %v158
    %v226 = vpop.f32.mrb[0].mxu0
    %v227 = vadd.f32 %v154, %v226
    %v228 = vpop.f32.mrb[0].mxu0
    %229 = vdwg.mxu0
    %v230 = vld [vmem:[#allocation7] sm:$0xff]
    %v231 = vld [vmem:[#allocation7 + $0x8] sm:$0xff]
    %v232 = vld [vmem:[#allocation7 + $0x10] sm:$0xff]
    %v233 = vld [vmem:[#allocation7 + $0x18] sm:$0xff]
    %v234 = vld [vmem:[#allocation8] sm:$0x1]
    %v236 = vlaneseq
    %v237 = vshrl.u32 %v236, 7
    %v238 = vsub.s32 0, %v237
    %v239 = vrot.slane %v234, %v238
    %v242 = vsel %vm156, %v144, 0
    %244 = vmatprep.subr.mxu0 0.0
    %245 = vmatpush1.msra.mxu0 %v230
    %246 = vmatprep.subr.mxu0 0.0
    %247 = vmatpush1.msra.mxu0 %v231
    %248 = vmatprep.subr.mxu0 0.0
    %249 = vmatpush1.msra.mxu0 %v232
    %250 = vmatprep.subr.mxu0 0.0
    %251 = vmatpush1.msra.mxu0 %v233
    %252 = vmatprep.subr.mxu0 0.0
    %253 = vmatpush1.msra.mxu0 0.0
    %254 = vmatprep.subr.mxu0 0.0
    %255 = vmatpush1.msra.mxu0 0.0
    %256 = vmatprep.subr.mxu0 0.0
    %257 = vmatpush1.msra.mxu0 0.0
    %258 = vmatprep.subr.mxu0 0.0
    %259 = vmatpush1.msra.mxu0 0.0
    %260 = vmatprep.subr.mxu0 0.0
    %261 = vmatpush1.msra.mxu0 0.0
    %262 = vmatprep.subr.mxu0 0.0
    %263 = vmatpush1.msra.mxu0 0.0
    %264 = vmatprep.subr.mxu0 0.0
    %265 = vmatpush1.msra.mxu0 0.0
    %266 = vmatprep.subr.mxu0 0.0
    %267 = vmatpush1.msra.mxu0 0.0
    %268 = vmatprep.subr.mxu0 0.0
    %269 = vmatpush1.msra.mxu0 0.0
    %270 = vmatprep.subr.mxu0 0.0
    %271 = vmatpush1.msra.mxu0 0.0
    %272 = vmatprep.subr.mxu0 0.0
    %273 = vmatpush1.msra.mxu0 0.0
    %274 = vmatprep.subr.mxu0 0.0
    %275 = vmatpush1.msra.mxu0 0.0
    %276 = vmatprep.subr.mxu0 0.0
    %277 = vmatpush1.msra.mxu0 0.0
    %278 = vmatprep.subr.mxu0 0.0
    %279 = vmatpush1.msra.mxu0 0.0
    %280 = vmatprep.subr.mxu0 0.0
    %281 = vmatpush1.msra.mxu0 0.0
    %282 = vmatprep.subr.mxu0 0.0
    %283 = vmatpush1.msra.mxu0 0.0
    %284 = vmatprep.subr.mxu0 0.0
    %285 = vmatpush1.msra.mxu0 0.0
    %286 = vmatprep.subr.mxu0 0.0
    %287 = vmatpush1.msra.mxu0 0.0
    %288 = vmatprep.subr.mxu0 0.0
    %289 = vmatpush1.msra.mxu0 0.0
    %290 = vmatprep.subr.mxu0 0.0
    %291 = vmatpush1.msra.mxu0 0.0
    %292 = vmatprep.subr.mxu0 0.0
    %293 = vmatpush1.msra.mxu0 0.0
    %294 = vmatprep.subr.mxu0 0.0
    %295 = vmatpush1.msra.mxu0 0.0
    %296 = vmatprep.subr.mxu0 0.0
    %297 = vmatpush1.msra.mxu0 0.0
    %298 = vmatprep.subr.mxu0 0.0
    %299 = vmatpush1.msra.mxu0 0.0
    %300 = vmatprep.subr.mxu0 0.0
    %301 = vmatpush1.msra.mxu0 0.0
    %302 = vmatprep.subr.mxu0 0.0
    %303 = vmatpush1.msra.mxu0 0.0
    %304 = vmatprep.subr.mxu0 0.0
    %305 = vmatpush1.msra.mxu0 0.0
    %306 = vmatprep.subr.mxu0 0.0
    %307 = vmatpush1.msra.mxu0 0.0
    %308 = vmatprep.mubr.f32.mxu0 0.0
    %309 = vmatmul.mubr.f32.gmra.mrb[0].mxu0 %v242
    %v310 = vpop.f32.mrb[0].mxu0
    %v311 = vadd.f32 %v239, %v310
    %v312 = vpop.f32.mrb[0].mxu0
    %313 = vdwg.mxu0
    %v314 = vadd.f32 %v227, %v311
    %v315 = vxor.u32 %v314, 2147483648
    %v316 = vmul.f32 %v315, 1.442695
    %v317 = vpow.pop %v316
    %v318 = vadd.f32 %v317, 1.0
    %v319 = vrcp.pop %v318
    %v320 = vmul.f32 1.0, %v319
    %322 = vrot.lane.b32.xlu0 %v311, 64
    %v323 = vpop.permute.xlu0 %322
    %v325 = vmul.f32 %v320, %v323
    %327 = vrot.lane.b32.xlu0 %v325, 64
    %v328 = vpop.permute.xlu0 %327
    %v330 = vadd.f32 %v227, %v328
    %v331 = vtanh.pop %v330
    %v332 = vsub.f32 1.0, %v320
    %334 = vrot.lane.b32.xlu0 %v331, 96
    %v335 = vpop.permute.xlu0 %334
    %v337 = vmul.f32 %v332, %v335
    %338 = vrot.lane.b32.xlu0 %v144, 32
    %v339 = vpop.permute.xlu0 %338
    %v341 = vmul.f32 %v320, %v339
    %v342 = vadd.f32 %v337, %v341
    %v343 = vld [vmem:[%s0] sm:$0xff]
    %v344 = vld [vmem:[%s0 + $0x8] sm:$0xff]
    %v345 = vld [vmem:[%s7] sm:$0xff]
    %v346 = vld [vmem:[%s7 + $0x8] sm:$0xff]
    %v347 = vld [vmem:[%s7 + $0x10] sm:$0xff]
    %v348 = vld [vmem:[%s7 + $0x18] sm:$0xff]
    %v349 = vld [vmem:[%s7 + $0x20] sm:$0xff]
    %v350 = vld [vmem:[%s7 + $0x28] sm:$0xff]
    %v351 = vld [vmem:[%s7 + $0x30] sm:$0xff]
    %v352 = vld [vmem:[%s7 + $0x38] sm:$0xff]
    %vm353 = vcmask 523264
    %v355 = vsel %vm353, %v343, 0
    %v358 = vsel %vm353, %v344, 0
    %360 = vmatprep.subr.mxu0 0.0
    %361 = vmatpush1.msra.mxu0 %v345
    %362 = vmatprep.subr.mxu0 0.0
    %363 = vmatpush1.msra.mxu0 %v346
    %364 = vmatprep.subr.mxu0 0.0
    %365 = vmatpush1.msra.mxu0 %v347
    %366 = vmatprep.subr.mxu0 0.0
    %367 = vmatpush1.msra.mxu0 %v348
    %368 = vmatprep.subr.mxu0 0.0
    %369 = vmatpush1.msra.mxu0 %v349
    %370 = vmatprep.subr.mxu0 0.0
    %371 = vmatpush1.msra.mxu0 %v350
    %372 = vmatprep.subr.mxu0 0.0
    %373 = vmatpush1.msra.mxu0 %v351
    %374 = vmatprep.subr.mxu0 0.0
    %375 = vmatpush1.msra.mxu0 %v352
    %376 = vmatprep.subr.mxu0 0.0
    %377 = vmatpush1.msra.mxu0 0.0
    %378 = vmatprep.subr.mxu0 0.0
    %379 = vmatpush1.msra.mxu0 0.0
    %380 = vmatprep.subr.mxu0 0.0
    %381 = vmatpush1.msra.mxu0 0.0
    %382 = vmatprep.subr.mxu0 0.0
    %383 = vmatpush1.msra.mxu0 0.0
    %384 = vmatprep.subr.mxu0 0.0
    %385 = vmatpush1.msra.mxu0 0.0
    %386 = vmatprep.subr.mxu0 0.0
    %387 = vmatpush1.msra.mxu0 0.0
    %388 = vmatprep.subr.mxu0 0.0
    %389 = vmatpush1.msra.mxu0 0.0
    %390 = vmatprep.subr.mxu0 0.0
    %391 = vmatpush1.msra.mxu0 0.0
    %392 = vmatprep.subr.mxu0 0.0
    %393 = vmatpush1.msra.mxu0 0.0
    %394 = vmatprep.subr.mxu0 0.0
    %395 = vmatpush1.msra.mxu0 0.0
    %396 = vmatprep.subr.mxu0 0.0
    %397 = vmatpush1.msra.mxu0 0.0
    %398 = vmatprep.subr.mxu0 0.0
    %399 = vmatpush1.msra.mxu0 0.0
    %400 = vmatprep.subr.mxu0 0.0
    %401 = vmatpush1.msra.mxu0 0.0
    %402 = vmatprep.subr.mxu0 0.0
    %403 = vmatpush1.msra.mxu0 0.0
    %404 = vmatprep.subr.mxu0 0.0
    %405 = vmatpush1.msra.mxu0 0.0
    %406 = vmatprep.subr.mxu0 0.0
    %407 = vmatpush1.msra.mxu0 0.0
    %408 = vmatprep.subr.mxu0 0.0
    %409 = vmatpush1.msra.mxu0 0.0
    %410 = vmatprep.subr.mxu0 0.0
    %411 = vmatpush1.msra.mxu0 0.0
    %412 = vmatprep.subr.mxu0 0.0
    %413 = vmatpush1.msra.mxu0 0.0
    %414 = vmatprep.subr.mxu0 0.0
    %415 = vmatpush1.msra.mxu0 0.0
    %416 = vmatprep.subr.mxu0 0.0
    %417 = vmatpush1.msra.mxu0 0.0
    %418 = vmatprep.subr.mxu0 0.0
    %419 = vmatpush1.msra.mxu0 0.0
    %420 = vmatprep.subr.mxu0 0.0
    %421 = vmatpush1.msra.mxu0 0.0
    %422 = vmatprep.subr.mxu0 0.0
    %423 = vmatpush1.msra.mxu0 0.0
    %424 = vmatprep.mubr.f32.mxu0 0.0
    %425 = vmatmul.mubr.f32.gmra.mrb[0].mxu0 %v355
    %v426 = vpop.f32.mrb[0].mxu0
    %v427 = vadd.f32 0.0, %v426
    %v428 = vpop.f32.mrb[0].mxu0
    %429 = vmatprep.mubr.f32.mxu0 0.0
    %430 = vmatmul.mubr.f32.gmra.mrb[0].mxu0 %v358
    %v431 = vpop.f32.mrb[0].mxu0
    %v432 = vadd.f32 0.0, %v431
    %v433 = vpop.f32.mrb[0].mxu0
    %434 = vdwg.mxu0
    %v435 = vld [vmem:[#allocation10] sm:$0xff]
    %v436 = vld [vmem:[#allocation10 + $0x8] sm:$0xff]
    %v437 = vld [vmem:[#allocation10 + $0x10] sm:$0xff]
    %v438 = vld [vmem:[#allocation10 + $0x18] sm:$0xff]
    %440 = vrot.lane.b32.xlu0 %v342, 96
    %v441 = vpop.permute.xlu0 %440
    %v442 = vsel %vm156, %v441, 0
    %444 = vmatprep.subr.mxu0 0.0
    %445 = vmatpush1.msra.mxu0 %v435
    %446 = vmatprep.subr.mxu0 0.0
    %447 = vmatpush1.msra.mxu0 %v436
    %448 = vmatprep.subr.mxu0 0.0
    %449 = vmatpush1.msra.mxu0 %v437
    %450 = vmatprep.subr.mxu0 0.0
    %451 = vmatpush1.msra.mxu0 %v438
    %452 = vmatprep.subr.mxu0 0.0
    %453 = vmatpush1.msra.mxu0 0.0
    %454 = vmatprep.subr.mxu0 0.0
    %455 = vmatpush1.msra.mxu0 0.0
    %456 = vmatprep.subr.mxu0 0.0
    %457 = vmatpush1.msra.mxu0 0.0
    %458 = vmatprep.subr.mxu0 0.0
    %459 = vmatpush1.msra.mxu0 0.0
    %460 = vmatprep.subr.mxu0 0.0
    %461 = vmatpush1.msra.mxu0 0.0
    %462 = vmatprep.subr.mxu0 0.0
    %463 = vmatpush1.msra.mxu0 0.0
    %464 = vmatprep.subr.mxu0 0.0
    %465 = vmatpush1.msra.mxu0 0.0
    %466 = vmatprep.subr.mxu0 0.0
    %467 = vmatpush1.msra.mxu0 0.0
    %468 = vmatprep.subr.mxu0 0.0
    %469 = vmatpush1.msra.mxu0 0.0
    %470 = vmatprep.subr.mxu0 0.0
    %471 = vmatpush1.msra.mxu0 0.0
    %472 = vmatprep.subr.mxu0 0.0
    %473 = vmatpush1.msra.mxu0 0.0
    %474 = vmatprep.subr.mxu0 0.0
    %475 = vmatpush1.msra.mxu0 0.0
    %476 = vmatprep.subr.mxu0 0.0
    %477 = vmatpush1.msra.mxu0 0.0
    %478 = vmatprep.subr.mxu0 0.0
    %479 = vmatpush1.msra.mxu0 0.0
    %480 = vmatprep.subr.mxu0 0.0
    %481 = vmatpush1.msra.mxu0 0.0
    %482 = vmatprep.subr.mxu0 0.0
    %483 = vmatpush1.msra.mxu0 0.0
    %484 = vmatprep.subr.mxu0 0.0
    %485 = vmatpush1.msra.mxu0 0.0
    %486 = vmatprep.subr.mxu0 0.0
    %487 = vmatpush1.msra.mxu0 0.0
    %488 = vmatprep.subr.mxu0 0.0
    %489 = vmatpush1.msra.mxu0 0.0
    %490 = vmatprep.subr.mxu0 0.0
    %491 = vmatpush1.msra.mxu0 0.0
    %492 = vmatprep.subr.mxu0 0.0
    %493 = vmatpush1.msra.mxu0 0.0
    %494 = vmatprep.subr.mxu0 0.0
    %495 = vmatpush1.msra.mxu0 0.0
    %496 = vmatprep.subr.mxu0 0.0
    %497 = vmatpush1.msra.mxu0 0.0
    %498 = vmatprep.subr.mxu0 0.0
    %499 = vmatpush1.msra.mxu0 0.0
    %500 = vmatprep.subr.mxu0 0.0
    %501 = vmatpush1.msra.mxu0 0.0
    %502 = vmatprep.subr.mxu0 0.0
    %503 = vmatpush1.msra.mxu0 0.0
    %504 = vmatprep.subr.mxu0 0.0
    %505 = vmatpush1.msra.mxu0 0.0
    %506 = vmatprep.subr.mxu0 0.0
    %507 = vmatpush1.msra.mxu0 0.0
    %508 = vmatprep.mubr.f32.mxu0 0.0
    %509 = vmatmul.mubr.f32.gmra.mrb[0].mxu0 %v442
    %v510 = vpop.f32.mrb[0].mxu0
    %v511 = vadd.f32 0.0, %v510
    %v512 = vpop.f32.mrb[0].mxu0
    %513 = vdwg.mxu0
    %v516 = vunpack.c.l.s4 1966171168
    %v517 = vunpack.c.0.s8 %v516
    %v518 = vlaneseq
    %v519 = vshrl.u32 %v518, 7
    %v520 = vsub.s32 %v517, %v519
    %v521 = vrot.slane %v511, %v520
    %v522 = vcombine.high %v521, %v521
    %v524 = vunpack.c.l.s4 1966171168
    %v525 = vunpack.c.0.s8 %v524
    %v526 = vlaneseq
    %v527 = vshrl.u32 %v526, 7
    %v528 = vsub.s32 %v525, %v527
    %v529 = vrot.slane %v521, %v528
    %v531 = vunpack.c.l.s4 1966171168
    %v532 = vunpack.c.0.s8 %v531
    %v533 = vlaneseq
    %v534 = vshrl.u32 %v533, 7
    %v535 = vsub.s32 %v532, %v534
    %v536 = vrot.slane %v522, %v535
    %v537 = vlaneseq
    %v538 = vshrl.u32 %v537, 7
    %v539 = vsub.s32 0, %v538
    %v540 = vrot.slane %v529, %v539
    %v541 = vlaneseq
    %v542 = vshrl.u32 %v541, 7
    %v543 = vsub.s32 0, %v542
    %v544 = vrot.slane %v536, %v543
    %v547 = vadd.f32 %v427, %v540
    %v548 = vadd.f32 %v432, %v544
    %v549 = vtanh.pop %v547
    %v550 = vtanh.pop %v548
    %v551 = vld [vmem:[#allocation13] sm:$0x1]
    %v553 = vlaneseq
    %v554 = vshrl.u32 %v553, 7
    %v555 = vsub.s32 0, %v554
    %v556 = vrot.slane %v551, %v555
    %v558 = vmul.f32 %v549, %v556
    %v559 = vmul.f32 %v550, %v556
    %v560 = vsel %vm156, %v558, 0.0
    %561 = vadd.xlane.f32.xlu0 %v560
    %v562 = vpop.xlane.xlu0 %561
    %v563 = vsel %vm156, %v559, 0.0
    %564 = vadd.xlane.f32.xlu0 %v563
    %v565 = vpop.xlane.xlu0 %564
    %v568 = vlaneseq
    %v569 = vand.u32 %v568, 127
    %v570 = vlaneseq
    %v571 = vshrl.u32 %v570, 7
    %v572 = vsub.s32 %v569, %v571
    %v573 = vrot.slane %v562, %v572
    %v574 = vlaneseq
    %v575 = vshrl.u32 %v574, 7
    %v576 = vsub.s32 %v569, %v575
    %v577 = vrot.slane %v565, %v576
    %vm578 = vcmask 1041409
    %v579 = vsel %vm578, %v577, %v573
    %vm581 = vcmask 58368
    %v582 = vsel %vm581, %v579, -inf
    %583 = vmax.xlane.f32.xlu0 %v582
    %v584 = vpop.xlane.xlu0 %583
    %v586 = vlaneseq
    %v587 = vshrl.u32 %v586, 7
    %v588 = vsub.s32 0, %v587
    %v589 = vrot.slane %v584, %v588
    %v590 = vlaneseq
    %v591 = vshrl.u32 %v590, 7
    %v592 = vsub.s32 1, %v591
    %v593 = vrot.slane %v584, %v592
    %v596 = vsub.f32 %v562, %v589
    %v597 = vsub.f32 %v565, %v593
    %v598 = vmul.f32 %v596, 1.442695
    %v599 = vpow.pop %v598
    %v600 = vmul.f32 %v597, 1.442695
    %v601 = vpow.pop %v600
    %604 = vset.pattern.permute.xlu0 0
    %605 = vperm.xlu0 %604, %v599
    %v606 = vpop.permute.xlu0 %605
    %607 = vset.pattern.permute.xlu0 0
    %608 = vperm.xlu0 %607, %v601
    %v609 = vpop.permute.xlu0 %608
    %v610 = vlaneseq
    %v611 = vshrl.u32 %v610, 7
    %v612 = vsub.s32 %v569, %v611
    %v613 = vrot.slane %v606, %v612
    %v614 = vlaneseq
    %v615 = vshrl.u32 %v614, 7
    %v616 = vsub.s32 %v569, %v615
    %v617 = vrot.slane %v609, %v616
    %v618 = vsel %vm578, %v617, %v613
    %v620 = vsel %vm581, %v618, 0.0
    %621 = vadd.xlane.f32.xlu0 %v620
    %v622 = vpop.xlane.xlu0 %621
    %v624 = vlaneseq
    %v625 = vshrl.u32 %v624, 7
    %v626 = vsub.s32 0, %v625
    %v627 = vrot.slane %v622, %v626
    %v628 = vlaneseq
    %v629 = vshrl.u32 %v628, 7
    %v630 = vsub.s32 1, %v629
    %v631 = vrot.slane %v622, %v630
    %v634 = vrcp.pop %v627
    %v635 = vmul.f32 %v599, %v634
    %v636 = vrcp.pop %v631
    %v637 = vmul.f32 %v601, %v636
    %639 = vset.pattern.permute.xlu0 0
    %640 = vperm.xlu0 %639, %v635
    %v641 = vpop.permute.xlu0 %640
    %v642 = vlaneseq
    %v643 = vshrl.u32 %v642, 7
    %v644 = vsub.s32 %v569, %v643
    %v645 = vrot.slane %v641, %v644
    %vm646 = vcmask 64512
    %v647 = vsel %vm646, %v645, 0
    %649 = vmatprep.subr.mxu0 0.0
    %650 = vmatpush1.msra.mxu0 %v343
    %651 = vmatprep.subr.mxu0 0.0
    %652 = vmatpush1.msra.mxu0 0.0
    %653 = vmatprep.subr.mxu0 0.0
    %654 = vmatpush1.msra.mxu0 0.0
    %655 = vmatprep.subr.mxu0 0.0
    %656 = vmatpush1.msra.mxu0 0.0
    %657 = vmatprep.subr.mxu0 0.0
    %658 = vmatpush1.msra.mxu0 0.0
    %659 = vmatprep.subr.mxu0 0.0
    %660 = vmatpush1.msra.mxu0 0.0
    %661 = vmatprep.subr.mxu0 0.0
    %662 = vmatpush1.msra.mxu0 0.0
    %663 = vmatprep.subr.mxu0 0.0
    %664 = vmatpush1.msra.mxu0 0.0
    %665 = vmatprep.subr.mxu0 0.0
    %666 = vmatpush1.msra.mxu0 0.0
    %667 = vmatprep.subr.mxu0 0.0
    %668 = vmatpush1.msra.mxu0 0.0
    %669 = vmatprep.subr.mxu0 0.0
    %670 = vmatpush1.msra.mxu0 0.0
    %671 = vmatprep.subr.mxu0 0.0
    %672 = vmatpush1.msra.mxu0 0.0
    %673 = vmatprep.subr.mxu0 0.0
    %674 = vmatpush1.msra.mxu0 0.0
    %675 = vmatprep.subr.mxu0 0.0
    %676 = vmatpush1.msra.mxu0 0.0
    %677 = vmatprep.subr.mxu0 0.0
    %678 = vmatpush1.msra.mxu0 0.0
    %679 = vmatprep.subr.mxu0 0.0
    %680 = vmatpush1.msra.mxu0 0.0
    %681 = vmatprep.subr.mxu0 0.0
    %682 = vmatpush1.msra.mxu0 0.0
    %683 = vmatprep.subr.mxu0 0.0
    %684 = vmatpush1.msra.mxu0 0.0
    %685 = vmatprep.subr.mxu0 0.0
    %686 = vmatpush1.msra.mxu0 0.0
    %687 = vmatprep.subr.mxu0 0.0
    %688 = vmatpush1.msra.mxu0 0.0
    %689 = vmatprep.subr.mxu0 0.0
    %690 = vmatpush1.msra.mxu0 0.0
    %691 = vmatprep.subr.mxu0 0.0
    %692 = vmatpush1.msra.mxu0 0.0
    %693 = vmatprep.subr.mxu0 0.0
    %694 = vmatpush1.msra.mxu0 0.0
    %695 = vmatprep.subr.mxu0 0.0
    %696 = vmatpush1.msra.mxu0 0.0
    %697 = vmatprep.subr.mxu0 0.0
    %698 = vmatpush1.msra.mxu0 0.0
    %699 = vmatprep.subr.mxu0 0.0
    %700 = vmatpush1.msra.mxu0 0.0
    %701 = vmatprep.subr.mxu0 0.0
    %702 = vmatpush1.msra.mxu0 0.0
    %703 = vmatprep.subr.mxu0 0.0
    %704 = vmatpush1.msra.mxu0 0.0
    %705 = vmatprep.subr.mxu0 0.0
    %706 = vmatpush1.msra.mxu0 0.0
    %707 = vmatprep.subr.mxu0 0.0
    %708 = vmatpush1.msra.mxu0 0.0
    %709 = vmatprep.subr.mxu0 0.0
    %710 = vmatpush1.msra.mxu0 0.0
    %711 = vmatprep.subr.mxu0 0.0
    %712 = vmatpush1.msra.mxu0 0.0
    %713 = vmatprep.mubr.f32.mxu0 0.0
    %714 = vmatmul.mubr.f32.gmra.mrb[0].mxu0 %v647
    %v715 = vpop.f32.mrb[0].mxu0
    %v716 = vadd.f32 0.0, %v715
    %v717 = vpop.f32.mrb[0].mxu0
    %718 = vdwg.mxu0
    %720 = vset.pattern.permute.xlu0 0
    %721 = vperm.xlu0 %720, %v637
    %v722 = vpop.permute.xlu0 %721
    %v723 = vlaneseq
    %v724 = vshrl.u32 %v723, 7
    %v725 = vsub.s32 %v569, %v724
    %v726 = vrot.slane %v722, %v725
    %v727 = vsel %vm646, %v726, 0
    %729 = vmatprep.subr.mxu0 0.0
    %730 = vmatpush1.msra.mxu0 %v344
    %731 = vmatprep.subr.mxu0 0.0
    %732 = vmatpush1.msra.mxu0 0.0
    %733 = vmatprep.subr.mxu0 0.0
    %734 = vmatpush1.msra.mxu0 0.0
    %735 = vmatprep.subr.mxu0 0.0
    %736 = vmatpush1.msra.mxu0 0.0
    %737 = vmatprep.subr.mxu0 0.0
    %738 = vmatpush1.msra.mxu0 0.0
    %739 = vmatprep.subr.mxu0 0.0
    %740 = vmatpush1.msra.mxu0 0.0
    %741 = vmatprep.subr.mxu0 0.0
    %742 = vmatpush1.msra.mxu0 0.0
    %743 = vmatprep.subr.mxu0 0.0
    %744 = vmatpush1.msra.mxu0 0.0
    %745 = vmatprep.subr.mxu0 0.0
    %746 = vmatpush1.msra.mxu0 0.0
    %747 = vmatprep.subr.mxu0 0.0
    %748 = vmatpush1.msra.mxu0 0.0
    %749 = vmatprep.subr.mxu0 0.0
    %750 = vmatpush1.msra.mxu0 0.0
    %751 = vmatprep.subr.mxu0 0.0
    %752 = vmatpush1.msra.mxu0 0.0
    %753 = vmatprep.subr.mxu0 0.0
    %754 = vmatpush1.msra.mxu0 0.0
    %755 = vmatprep.subr.mxu0 0.0
    %756 = vmatpush1.msra.mxu0 0.0
    %757 = vmatprep.subr.mxu0 0.0
    %758 = vmatpush1.msra.mxu0 0.0
    %759 = vmatprep.subr.mxu0 0.0
    %760 = vmatpush1.msra.mxu0 0.0
    %761 = vmatprep.subr.mxu0 0.0
    %762 = vmatpush1.msra.mxu0 0.0
    %763 = vmatprep.subr.mxu0 0.0
    %764 = vmatpush1.msra.mxu0 0.0
    %765 = vmatprep.subr.mxu0 0.0
    %766 = vmatpush1.msra.mxu0 0.0
    %767 = vmatprep.subr.mxu0 0.0
    %768 = vmatpush1.msra.mxu0 0.0
    %769 = vmatprep.subr.mxu0 0.0
    %770 = vmatpush1.msra.mxu0 0.0
    %771 = vmatprep.subr.mxu0 0.0
    %772 = vmatpush1.msra.mxu0 0.0
    %773 = vmatprep.subr.mxu0 0.0
    %774 = vmatpush1.msra.mxu0 0.0
    %775 = vmatprep.subr.mxu0 0.0
    %776 = vmatpush1.msra.mxu0 0.0
    %777 = vmatprep.subr.mxu0 0.0
    %778 = vmatpush1.msra.mxu0 0.0
    %779 = vmatprep.subr.mxu0 0.0
    %780 = vmatpush1.msra.mxu0 0.0
    %781 = vmatprep.subr.mxu0 0.0
    %782 = vmatpush1.msra.mxu0 0.0
    %783 = vmatprep.subr.mxu0 0.0
    %784 = vmatpush1.msra.mxu0 0.0
    %785 = vmatprep.subr.mxu0 0.0
    %786 = vmatpush1.msra.mxu0 0.0
    %787 = vmatprep.subr.mxu0 0.0
    %788 = vmatpush1.msra.mxu0 0.0
    %789 = vmatprep.subr.mxu0 0.0
    %790 = vmatpush1.msra.mxu0 0.0
    %791 = vmatprep.subr.mxu0 0.0
    %792 = vmatpush1.msra.mxu0 0.0
    %793 = vmatprep.mubr.f32.mxu0 0.0
    %794 = vmatmul.mubr.f32.gmra.mrb[0].mxu0 %v727
    %v795 = vpop.f32.mrb[0].mxu0
    %v796 = vadd.f32 0.0, %v795
    %v797 = vpop.f32.mrb[0].mxu0
    %798 = vdwg.mxu0
    %v799 = vld [vmem:[#allocation11] sm:$0xff]
    %v800 = vld [vmem:[#allocation11 + $0x8] sm:$0xff]
    %v801 = vld [vmem:[#allocation11 + $0x10] sm:$0xff]
    %v802 = vld [vmem:[#allocation11 + $0x18] sm:$0xff]
    %v805 = vrot.slane %v796, 7
    %v806 = vsel %vm578, %v805, %v716
    %v807 = vsel %vm156, %v806, 0
    %809 = vmatprep.subr.mxu0 0.0
    %810 = vmatpush1.msra.mxu0 %v799
    %811 = vmatprep.subr.mxu0 0.0
    %812 = vmatpush1.msra.mxu0 %v800
    %813 = vmatprep.subr.mxu0 0.0
    %814 = vmatpush1.msra.mxu0 %v801
    %815 = vmatprep.subr.mxu0 0.0
    %816 = vmatpush1.msra.mxu0 %v802
    %817 = vmatprep.subr.mxu0 0.0
    %818 = vmatpush1.msra.mxu0 0.0
    %819 = vmatprep.subr.mxu0 0.0
    %820 = vmatpush1.msra.mxu0 0.0
    %821 = vmatprep.subr.mxu0 0.0
    %822 = vmatpush1.msra.mxu0 0.0
    %823 = vmatprep.subr.mxu0 0.0
    %824 = vmatpush1.msra.mxu0 0.0
    %825 = vmatprep.subr.mxu0 0.0
    %826 = vmatpush1.msra.mxu0 0.0
    %827 = vmatprep.subr.mxu0 0.0
    %828 = vmatpush1.msra.mxu0 0.0
    %829 = vmatprep.subr.mxu0 0.0
    %830 = vmatpush1.msra.mxu0 0.0
    %831 = vmatprep.subr.mxu0 0.0
    %832 = vmatpush1.msra.mxu0 0.0
    %833 = vmatprep.subr.mxu0 0.0
    %834 = vmatpush1.msra.mxu0 0.0
    %835 = vmatprep.subr.mxu0 0.0
    %836 = vmatpush1.msra.mxu0 0.0
    %837 = vmatprep.subr.mxu0 0.0
    %838 = vmatpush1.msra.mxu0 0.0
    %839 = vmatprep.subr.mxu0 0.0
    %840 = vmatpush1.msra.mxu0 0.0
    %841 = vmatprep.subr.mxu0 0.0
    %842 = vmatpush1.msra.mxu0 0.0
    %843 = vmatprep.subr.mxu0 0.0
    %844 = vmatpush1.msra.mxu0 0.0
    %845 = vmatprep.subr.mxu0 0.0
    %846 = vmatpush1.msra.mxu0 0.0
    %847 = vmatprep.subr.mxu0 0.0
    %848 = vmatpush1.msra.mxu0 0.0
    %849 = vmatprep.subr.mxu0 0.0
    %850 = vmatpush1.msra.mxu0 0.0
    %851 = vmatprep.subr.mxu0 0.0
    %852 = vmatpush1.msra.mxu0 0.0
    %853 = vmatprep.subr.mxu0 0.0
    %854 = vmatpush1.msra.mxu0 0.0
    %855 = vmatprep.subr.mxu0 0.0
    %856 = vmatpush1.msra.mxu0 0.0
    %857 = vmatprep.subr.mxu0 0.0
    %858 = vmatpush1.msra.mxu0 0.0
    %859 = vmatprep.subr.mxu0 0.0
    %860 = vmatpush1.msra.mxu0 0.0
    %861 = vmatprep.subr.mxu0 0.0
    %862 = vmatpush1.msra.mxu0 0.0
    %863 = vmatprep.subr.mxu0 0.0
    %864 = vmatpush1.msra.mxu0 0.0
    %865 = vmatprep.subr.mxu0 0.0
    %866 = vmatpush1.msra.mxu0 0.0
    %867 = vmatprep.subr.mxu0 0.0
    %868 = vmatpush1.msra.mxu0 0.0
    %869 = vmatprep.subr.mxu0 0.0
    %870 = vmatpush1.msra.mxu0 0.0
    %871 = vmatprep.subr.mxu0 0.0
    %872 = vmatpush1.msra.mxu0 0.0
    %873 = vmatprep.mubr.f32.mxu0 0.0
    %874 = vmatmul.mubr.f32.gmra.mrb[0].mxu0 %v807
    %v875 = vpop.f32.mrb[0].mxu0
    %v876 = vadd.f32 0.0, %v875
    %v877 = vpop.f32.mrb[0].mxu0
    %878 = vdwg.mxu0
    %v881 = vunpack.c.l.s4 1966171168
    %v882 = vunpack.c.0.s8 %v881
    %v883 = vlaneseq
    %v884 = vshrl.u32 %v883, 7
    %v885 = vsub.s32 %v882, %v884
    %v886 = vrot.slane %v876, %v885
    %v887 = vcombine.high %v886, %v886
    %v889 = vunpack.c.l.s4 1966171168
    %v890 = vunpack.c.0.s8 %v889
    %v891 = vlaneseq
    %v892 = vshrl.u32 %v891, 7
    %v893 = vsub.s32 %v890, %v892
    %v894 = vrot.slane %v886, %v893
    %v896 = vunpack.c.l.s4 1966171168
    %v897 = vunpack.c.0.s8 %v896
    %v898 = vlaneseq
    %v899 = vshrl.u32 %v898, 7
    %v900 = vsub.s32 %v897, %v899
    %v901 = vrot.slane %v887, %v900
    %v902 = vlaneseq
    %v903 = vshrl.u32 %v902, 7
    %v904 = vsub.s32 0, %v903
    %v905 = vrot.slane %v894, %v904
    %v906 = vlaneseq
    %v907 = vshrl.u32 %v906, 7
    %v908 = vsub.s32 0, %v907
    %v909 = vrot.slane %v901, %v908
    %910 = vrot.lane.b32.xlu0 %v905, 32
    %v911 = vpop.permute.xlu0 %910
    %912 = vrot.lane.b32.xlu0 %v909, 32
    %v913 = vpop.permute.xlu0 %912
    %v916 = vadd.f32 %v427, %v911
    %v917 = vadd.f32 %v432, %v913
    %v918 = vtanh.pop %v916
    %v919 = vtanh.pop %v917
    %v920 = vld [vmem:[#allocation14] sm:$0x1]
    %v922 = vlaneseq
    %v923 = vshrl.u32 %v922, 7
    %v924 = vsub.s32 0, %v923
    %v925 = vrot.slane %v920, %v924
    %926 = vrot.lane.b32.xlu0 %v925, 32
    %v927 = vpop.permute.xlu0 %926
    %v929 = vmul.f32 %v918, %v927
    %v930 = vmul.f32 %v919, %v927
    %933 = vrot.lane.b32.xlu0 %v929, 96
    %v934 = vpop.permute.xlu0 %933
    %935 = vrot.lane.b32.xlu0 %v930, 96
    %v936 = vpop.permute.xlu0 %935
    %v939 = vsel %vm156, %v934, 0.0
    %940 = vadd.xlane.f32.xlu0 %v939
    %v941 = vpop.xlane.xlu0 %940
    %v942 = vsel %vm156, %v936, 0.0
    %943 = vadd.xlane.f32.xlu0 %v942
    %v944 = vpop.xlane.xlu0 %943
    %v947 = vlaneseq
    %v948 = vshrl.u32 %v947, 7
    %v949 = vsub.s32 %v569, %v948
    %v950 = vrot.slane %v941, %v949
    %v951 = vlaneseq
    %v952 = vshrl.u32 %v951, 7
    %v953 = vsub.s32 %v569, %v952
    %v954 = vrot.slane %v944, %v953
    %v955 = vsel %vm578, %v954, %v950
    %v957 = vsel %vm646, %v955, 0.0
    %958 = vst [vmem:[#allocation16] sm:$0x3] %v957
    %v960 = vsel %vm156, %v441, 0.0
    %961 = vst [vmem:[%s13] sm:$0x3] %v960
    // Predicated region
    $region82: #{pointer_forward.1} parent=1 // pred_check
      _
    $region83: #{pointer_forward.1} parent=1 // pred_check_branch
      %963 = sbr.rel (0) target = $region85
    $region84: #{pointer_forward.1} parent=1 // pred_region
      %s965 = ssub.s32 32, 32
      %966 = vsyncadd [#allocation4], %s965
      %s968 = sshll.u32 [#allocation16], 4
      %s969 = int_to_ptr.vmem [resolvable:$true] %s968
      %971 = dma.vmem_to_hbm [thread:$0]  %s969, 32, %s12, [#allocation4]
    $region85: #{pointer_forward.1} parent=1 // pred_fallthru
      _
    // Predicated region
    $region86: #{pointer_forward.1} parent=1 // pred_check
      _
    $region87: #{pointer_forward.1} parent=1 // pred_check_branch
      %973 = sbr.rel (0) target = $region89
    $region88: #{pointer_forward.1} parent=1 // pred_region
      _
    $region89: #{pointer_forward.1} parent=1 // pred_fallthru
      _
    // Predicated region
    $region90: #{pointer_forward.1} parent=1 // pred_check
      _
    $region91: #{pointer_forward.1} parent=1 // pred_check_branch
      %975 = sbr.rel (0) target = $region93
    $region92: #{pointer_forward.1} parent=1 // pred_region
      %976 = dma.done [#allocation4], 32
    $region93: #{pointer_forward.1} parent=1 // pred_fallthru
      _
    // Predicated region
    $region94: #{pointer_forward.1} parent=1 // pred_check
      _
    $region95: #{pointer_forward.1} parent=1 // pred_check_branch
      %978 = sbr.rel (0) target = $region97
    $region96: #{pointer_forward.1} parent=1 // pred_region
      _
    $region97: #{pointer_forward.1} parent=1 // pred_fallthru
      _
    %979 = vsyncpa [#allocation3], 1
    %980 = vsyncpa [#allocation6], 1
    %981 = vsyncpa [#allocation9], 1
    %982 = vsyncpa [#allocation12], 1
    %983 = vsyncpa [#allocation15], 1
    %984 = vsyncpa [#allocation4], 1

</llo_original>
